<compile_context>
chip_gen: v7x
topology: tpu7x:2x2x1
jax: 0.10.0
libtpu: 0.0.40
codegen_flags: <defaults>
</compile_context>

<pallas_src>
import math

import jax
import jax.numpy as jnp
from jax.experimental import pallas as pl
from jax.experimental.pallas import tpu as pltpu

_GELU_K = math.sqrt(2.0 / math.pi)


def _ffn_kernel(x_ref, w_fc_ref, w_proj_ref, o_ref, acc_ref):
    # x_ref:      (tm, C)  bf16 row tile (constant across the k axis)
    # w_fc_ref:   (C, th)  bf16 c_fc column slice for hidden tile k
    # w_proj_ref: (th, C)  bf16 c_proj row slice for hidden tile k
    # o_ref:      (tm, C)  output tile (written on last k)
    # acc_ref:    (tm, C)  f32 accumulator scratch
    k = pl.program_id(1)

    @pl.when(k == 0)
    def _():
        acc_ref[...] = jnp.zeros_like(acc_ref)

    # c_fc slice: (tm, C) @ (C, th) -> (tm, th), f32 accumulation on the MXU.
    h = jnp.dot(x_ref[...], w_fc_ref[...], preferred_element_type=jnp.float32)

    # new_gelu (tanh approximation), f32; elementwise so per-slice is exact.
    inner = _GELU_K * (h + 0.044715 * (h * h * h))
    h = 0.5 * h * (1.0 + jnp.tanh(inner))

    # c_proj partial: (tm, th) @ (th, C) -> (tm, C), accumulated over k in f32.
    acc_ref[...] += jnp.dot(h.astype(w_proj_ref.dtype), w_proj_ref[...],
                            preferred_element_type=jnp.float32)

    @pl.when(k == pl.num_programs(1) - 1)
    def _():
        o_ref[...] = acc_ref[...].astype(o_ref.dtype)
    # TODO(synk): train-mode dropout (pltpu.prng_random_bits mask + scale) not
    # implemented; eval mode -> identity, matching nn.Dropout.eval().


def _pick_hidden_tile(H, max_th):
    """Largest th <= max_th with th % 128 == 0 and H % th == 0; else full H."""
    if H % 128 != 0:
        return H
    th = min((max_th // 128) * 128, H)
    while th >= 128:
        if H % th == 0:
            return th
        th -= 128
    return H


def feedforward_forward(x, w_fc_t, w_proj_t, *, block_rows=256, block_hidden=512,
                        compute_dtype=jnp.bfloat16, out_dtype=None,
                        vmem_limit_bytes=48 * 1024 * 1024):
    """FeedForward forward pass (fused c_fc -> new_gelu -> c_proj, dropout=id).

    x:        (B, T, C)  -- ideally already compute_dtype (bf16)
    w_fc_t:   (C, 4C)    -- c_fc.weight.T   (PyTorch weight is (4C, C)), bf16
    w_proj_t: (4C, C)    -- c_proj.weight.T (PyTorch weight is (C, 4C)), bf16
    returns:  (B, T, C)  in out_dtype (default compute_dtype)
    """
    B, T, C = x.shape
    H = w_fc_t.shape[1]          # 4*C
    assert w_fc_t.shape == (C, H) and w_proj_t.shape == (H, C)
    if out_dtype is None:
        out_dtype = compute_dtype

    M = B * T
    x2 = x.reshape(M, C)

    # Row tile: multiple of 16 (bf16 packs 16 rows per sublane group). On
    # v6e/v7x prefer multiples of 256 when M allows (block_rows default).
    if M <= block_rows:
        tm = max(16, ((M + 15) // 16) * 16)
    else:
        tm = block_rows
    m_pad = ((M + tm - 1) // tm) * tm
    if m_pad != M:
        # TODO(synk): prefer picking tm to divide M; the pad + final slice each
        # cost an extra HBM pass that the pipeline does not hide.
        x2 = jnp.pad(x2, ((0, m_pad - M), (0, 0)))

    # Operands should already be compute_dtype (converted once, outside the hot
    # path); these casts are fallbacks only.
    if x2.dtype != compute_dtype:
        x2 = x2.astype(compute_dtype)
    w_fc = w_fc_t if w_fc_t.dtype == compute_dtype else w_fc_t.astype(compute_dtype)
    w_proj = w_proj_t if w_proj_t.dtype == compute_dtype else w_proj_t.astype(compute_dtype)

    th = _pick_hidden_tile(H, block_hidden)
    grid = (m_pad // tm, H // th)

    out = pl.pallas_call(
        _ffn_kernel,
        out_shape=jax.ShapeDtypeStruct((m_pad, C), out_dtype),
        grid_spec=pltpu.PrefetchScalarGridSpec(
            num_scalar_prefetch=0,
            grid=grid,
            in_specs=[
                pl.BlockSpec((tm, C), lambda i, k: (i, 0)),   # rows; const in k -> 1 DMA per i
                pl.BlockSpec((C, th), lambda i, k: (0, k)),   # c_fc columns, tiled over k
                pl.BlockSpec((th, C), lambda i, k: (k, 0)),   # c_proj rows,   tiled over k
            ],
            out_specs=pl.BlockSpec((tm, C), lambda i, k: (i, 0)),  # const in k (accumulator)
            scratch_shapes=[pltpu.VMEM((tm, C), jnp.float32)],
        ),
        compiler_params=pltpu.CompilerParams(
            dimension_semantics=("parallel", "arbitrary"),
            vmem_limit_bytes=vmem_limit_bytes,
        ),
    )(x2, w_fc, w_proj)

    if m_pad != M:
        out = out[:M]
    return out.reshape(B, T, C)


def feedforward_reference(x, w_fc_t, w_proj_t, compute_dtype=jnp.bfloat16,
                          out_dtype=None):
    """Pure-JAX reference mirroring the PyTorch forward (dropout = identity),
    with the same bf16-operand / f32-accumulate numerics as the kernel.
    NOTE: this validates the kernel's mixed-precision path, not the full-f32
    PyTorch forward (expect ~1e-2-level relative deltas vs full f32 at large C).
    """
    if out_dtype is None:
        out_dtype = compute_dtype
    xb = x.astype(compute_dtype)
    h = jnp.dot(xb, w_fc_t.astype(compute_dtype),
                preferred_element_type=jnp.float32)
    h = 0.5 * h * (1.0 + jnp.tanh(_GELU_K * (h + 0.044715 * h ** 3)))
    y = jnp.dot(h.astype(compute_dtype), w_proj_t.astype(compute_dtype),
                preferred_element_type=jnp.float32)
    return y.astype(out_dtype)


if __name__ == "__main__":
    # Small, lane-dense config: n_embd=128 (C multiple of 128 -> unmasked vst),
    # hidden 4*128=512, batch=2, seq=8. Dropout is eval-mode identity.
    B, T, C = 2, 8, 128
    H = 4 * C

    key = jax.random.PRNGKey(0)
    kx, kfc, kproj = jax.random.split(key, 3)

    x = jax.random.normal(kx, (B, T, C), dtype=jnp.float32)

    # nn.Linear(in, out, bias=False).weight has shape (out, in); init uniformly
    # like PyTorch and pass the transposes to the kernel.
    b_fc = 1.0 / math.sqrt(C)
    b_proj = 1.0 / math.sqrt(H)
    w_fc = jax.random.uniform(kfc, (H, C), minval=-b_fc, maxval=b_fc,
                              dtype=jnp.float32)
    w_proj = jax.random.uniform(kproj, (C, H), minval=-b_proj, maxval=b_proj,
                                dtype=jnp.float32)

    # One-time conversions OUTSIDE the hot path (producer supplies bf16).
    w_fc_t_bf = jnp.asarray(w_fc.T, dtype=jnp.bfloat16)      # (C, 4C)
    w_proj_t_bf = jnp.asarray(w_proj.T, dtype=jnp.bfloat16)  # (4C, C)
    x_bf = x.astype(jnp.bfloat16)

    # block_hidden=128 -> 4-step hidden reduction, exercising the accumulator.
    out = feedforward_forward(x_bf, w_fc_t_bf, w_proj_t_bf, block_hidden=128)
    out = jax.block_until_ready(out)

    ref = feedforward_reference(x, w_fc.T, w_proj.T)
    assert out.shape == (B, T, C)
    assert jnp.allclose(out.astype(jnp.float32), ref.astype(jnp.float32),
                        atol=2e-2, rtol=2e-2), "mismatch vs reference"

    print("KERNEL_OK")
</pallas_src>

<mosaic_0001>
module attributes {stable_mosaic.version = 11 : i64} {
  func.func @_ffn_kernel(%arg0: i32, %arg1: i32, %arg2: memref<16x128xbf16, #tpu.memory_space<vmem>>, %arg3: memref<128x128xbf16, #tpu.memory_space<vmem>>, %arg4: memref<128x128xbf16, #tpu.memory_space<vmem>>, %arg5: memref<16x128xbf16, #tpu.memory_space<vmem>>, %arg6: memref<16x128xf32, #tpu.memory_space<vmem>>) attributes {dimension_semantics = [#tpu.dimension_semantics<parallel>, #tpu.dimension_semantics<arbitrary>], iteration_bounds = array<i64: 1, 4>, scalar_prefetch = 0 : i64, scratch_operands = 1 : i64, tpu.core_type = #tpu.core_type<tc>, window_params = [{transform_indices = @transform_0, window_bounds = array<i64: 16, 128>}, {transform_indices = @transform_1, window_bounds = array<i64: 128, 128>}, {transform_indices = @transform_2, window_bounds = array<i64: 128, 128>}, {transform_indices = @transform_3, window_bounds = array<i64: 16, 128>}]} {
    %c0_i32 = arith.constant 0 : i32
    %0 = arith.cmpi eq, %arg1, %c0_i32 : i32
    %1 = arith.extui %0 : i1 to i32
    %c0_i32_0 = arith.constant 0 : i32
    %2 = arith.cmpi ne, %1, %c0_i32_0 : i32
    scf.if %2 {
      %cst_16 = arith.constant 0.000000e+00 : f32
      %28 = vector.broadcast %cst_16 : f32 to vector<16x128xf32>
      %c0_17 = arith.constant 0 : index
      %c0_18 = arith.constant 0 : index
      %29 = vector.load %arg6[%c0_17, %c0_18] : memref<16x128xf32, #tpu.memory_space<vmem>>, vector<16x128xf32>
      tpu.vector_store %arg6[%c0_17, %c0_18], %28 {strides = array<i32>} : memref<16x128xf32, #tpu.memory_space<vmem>>, vector<16x128xf32>,
    } else {
    }
    %c0 = arith.constant 0 : index
    %c0_1 = arith.constant 0 : index
    %3 = vector.load %arg2[%c0, %c0_1] : memref<16x128xbf16, #tpu.memory_space<vmem>>, vector<16x128xbf16>
    %c0_2 = arith.constant 0 : index
    %c0_3 = arith.constant 0 : index
    %4 = vector.load %arg3[%c0_2, %c0_3] : memref<128x128xbf16, #tpu.memory_space<vmem>>, vector<128x128xbf16>
    %cst = arith.constant dense<0.000000e+00> : vector<16x128xf32>
    %5 = tpu.matmul %3, %4, %cst {dimension_numbers = #tpu.dot_dimension_numbers<[1], [0], [0], [1], [0, 0, 1, 1], [], []>} : vector<16x128xbf16>, vector<128x128xbf16>, vector<16x128xf32> -> vector<16x128xf32>
    %6 = arith.mulf %5, %5 : vector<16x128xf32>
    %7 = arith.mulf %6, %5 : vector<16x128xf32>
    %cst_4 = arith.constant 4.471500e-02 : f32
    %8 = vector.broadcast %cst_4 : f32 to vector<16x128xf32>
    %9 = arith.mulf %8, %7 : vector<16x128xf32>
    %10 = arith.addf %5, %9 : vector<16x128xf32>
    %cst_5 = arith.constant 0.797884583 : f32
    %11 = vector.broadcast %cst_5 : f32 to vector<16x128xf32>
    %12 = arith.mulf %11, %10 : vector<16x128xf32>
    %cst_6 = arith.constant 5.000000e-01 : f32
    %13 = vector.broadcast %cst_6 : f32 to vector<16x128xf32>
    %14 = arith.mulf %13, %5 : vector<16x128xf32>
    %15 = math.tanh %12 : vector<16x128xf32>
    %cst_7 = arith.constant 1.000000e+00 : f32
    %16 = vector.broadcast %cst_7 : f32 to vector<16x128xf32>
    %17 = arith.addf %16, %15 : vector<16x128xf32>
    %18 = arith.mulf %14, %17 : vector<16x128xf32>
    %c0_8 = arith.constant 0 : index
    %c0_9 = arith.constant 0 : index
    %19 = vector.load %arg6[%c0_8, %c0_9] : memref<16x128xf32, #tpu.memory_space<vmem>>, vector<16x128xf32>
    %20 = arith.truncf %18 : vector<16x128xf32> to vector<16x128xbf16>
    %c0_10 = arith.constant 0 : index
    %c0_11 = arith.constant 0 : index
    %21 = vector.load %arg4[%c0_10, %c0_11] : memref<128x128xbf16, #tpu.memory_space<vmem>>, vector<128x128xbf16>
    %cst_12 = arith.constant dense<0.000000e+00> : vector<16x128xf32>
    %22 = tpu.matmul %20, %21, %cst_12 {dimension_numbers = #tpu.dot_dimension_numbers<[1], [0], [0], [1], [0, 0, 1, 1], [], []>} : vector<16x128xbf16>, vector<128x128xbf16>, vector<16x128xf32> -> vector<16x128xf32>
    %23 = arith.addf %19, %22 : vector<16x128xf32>
    %c0_13 = arith.constant 0 : index
    %c0_14 = arith.constant 0 : index
    %24 = vector.load %arg6[%c0_13, %c0_14] : memref<16x128xf32, #tpu.memory_space<vmem>>, vector<16x128xf32>
    tpu.vector_store %arg6[%c0_13, %c0_14], %23 {strides = array<i32>} : memref<16x128xf32, #tpu.memory_space<vmem>>, vector<16x128xf32>,
    %c3_i32 = arith.constant 3 : i32
    %25 = arith.cmpi eq, %arg1, %c3_i32 : i32
    %26 = arith.extui %25 : i1 to i32
    %c0_i32_15 = arith.constant 0 : i32
    %27 = arith.cmpi ne, %26, %c0_i32_15 : i32
    scf.if %27 {
      %c0_16 = arith.constant 0 : index
      %c0_17 = arith.constant 0 : index
      %28 = vector.load %arg6[%c0_16, %c0_17] : memref<16x128xf32, #tpu.memory_space<vmem>>, vector<16x128xf32>
      %29 = arith.truncf %28 : vector<16x128xf32> to vector<16x128xbf16>
      %c0_18 = arith.constant 0 : index
      %c0_19 = arith.constant 0 : index
      %30 = vector.load %arg5[%c0_18, %c0_19] : memref<16x128xbf16, #tpu.memory_space<vmem>>, vector<16x128xbf16>
      tpu.vector_store %arg5[%c0_18, %c0_19], %29 {strides = array<i32>} : memref<16x128xbf16, #tpu.memory_space<vmem>>, vector<16x128xbf16>,
    } else {
    }
    return
  }
  func.func @transform_0(%arg0: i32, %arg1: i32) -> (i32, i32) {
    %c0_i32 = arith.constant 0 : i32
    %c0_i32_0 = arith.constant 0 : i32
    return %arg0, %c0_i32 : i32, i32
  }
  func.func @transform_1(%arg0: i32, %arg1: i32) -> (i32, i32) {
    %c0_i32 = arith.constant 0 : i32
    %c0_i32_0 = arith.constant 0 : i32
    return %c0_i32, %arg1 : i32, i32
  }
  func.func @transform_2(%arg0: i32, %arg1: i32) -> (i32, i32) {
    %c0_i32 = arith.constant 0 : i32
    %c0_i32_0 = arith.constant 0 : i32
    return %arg1, %c0_i32 : i32, i32
  }
  func.func @transform_3(%arg0: i32, %arg1: i32) -> (i32, i32) {
    %c0_i32 = arith.constant 0 : i32
    %c0_i32_0 = arith.constant 0 : i32
    return %arg0, %c0_i32 : i32, i32
  }
}

</mosaic_0001>

<llo_original>
// kernel: tpu_custom_call.1
$region0: #{tpu_custom_call.1}
  #allocation0 [shape = 'u32[]', space=smem, size = 0x4, offset = 0x4, fixed_abs, tag = 'smem constant byte address 0x4 - core index']
  #allocation1 [shape = 'u32[144,128]{1,0:T(1,128)}', space=vmem, size = 0x12000, scoped, tag = 'internal scratch']
  #allocation2 [shape = 'f32[16,128]{1,0:T(8,128)}', space=vmem, size = 0x2000, scoped, tag = 'scratch operand']
  %s0 = inlined_call_operand.hbm [shape: bf16[16,128], index: 0, kind: input, shape index: {}]
  %s1 = inlined_call_operand.hbm [shape: bf16[128,512], index: 1, kind: input, shape index: {}]
  %s2 = inlined_call_operand.hbm [shape: bf16[512,128], index: 2, kind: input, shape index: {}]
  %s3 = inlined_call_operand.hbm [shape: bf16[16,128], index: 3, kind: output, shape index: {}]
  %s4 = sld [smem:[#allocation0]]
  $region65: #{tpu_custom_call.1} parent=0
    _
  %s6 = ssub.s32 1, %s4
  %s7 = scalar_select 0, %s6, %s4
  $region1: #{tpu_custom_call.1} parent=0
    #allocation3 [shape = 'u8[4096]{0}', space=vmem, size = 0x1000, scoped, tag = 'input window, operand 0, single buffered']
    #allocation4 [shape = 's32[2]{0}', space=sflag, size = 0x8, scoped, tag = 'scoped memory for tpu_custom_call.1']
    #allocation5 [shape = 's32[2]{0}', space=sflag, size = 0x8, scoped, tag = 'scoped memory for tpu_custom_call.1']
    #allocation6 [shape = 'u8[65536]{0}', space=vmem, size = 0x10000, scoped, tag = 'input window, operand 1']
    #allocation7 [shape = 's32[2]{0}', space=sflag, size = 0x8, scoped, tag = 'scoped memory for tpu_custom_call.1']
    #allocation8 [shape = 'u8[65536]{0}', space=vmem, size = 0x10000, scoped, tag = 'input window, operand 2']
    #allocation9 [shape = 'u8[4096]{0}', space=vmem, size = 0x1000, scoped, tag = 'output window, operand 0, single buffered']
    %8 = vsyncpa [#allocation4], 0
    %9 = vsyncpa [#allocation7], 0
    %s10 = scalar_lea.sflag [#allocation7], 1
    %11 = vsyncpa %s10, 0
    %12 = vsyncpa [#allocation5], 0
    loop: start=0, step=1, limit=6
    $region2: #{tpu_custom_call.1} parent=1 // loop_pre_header
      _
    $region3: #{tpu_custom_call.1} parent=1 // loop_header
      %s14 = sphi 0, %s18
      %p15 = scmp.ge.s32.totalorder %s14, 6
      %s21 = sphi 0, %s33
      %s22 = sphi 0, %s29
      %s23 = sphi 0, %s21
      %s24 = sphi 0, %s22
      %s25 = sphi 0, %s23
      %s26 = sphi 0, %s24
      %s36 = sphi 0, %s38
      %s39 = sphi 0, %s36
      %s40 = sphi 0, %s39
      %s56 = sphi 0, %s40
      %s62 = sphi 0, %s64
      %s65 = sphi 0, %s62
      %s66 = sphi 0, %s65
      %s82 = sphi 0, %s66
      %s88 = sphi 0, %s90
      %s91 = sphi 0, %s88
      %s92 = sphi 0, %s91
      %s108 = sphi 0, %s92
      %s114 = sphi 0, %s116
      %s117 = sphi 0, %s114
      %s118 = sphi 0, %s117
      %s134 = sphi 0, %s118
    $region4: #{tpu_custom_call.1} parent=1 // loop_header_branch
      %17 = sbr.rel (%p15) target = $region8
    $region5: #{tpu_custom_call.1} parent=1 // loop_body
      %s19 = ssub.s32 %s14, 1
      %s20 = ssub.s32 %s14, 2
      %s27 = sadd.s32 1, %s22
      %p28 = scmp.ge.s32.totalorder %s27, 4
      %s29 = scalar_select %p28, 0, %s27
      %s30 = sadd.s32 1, %s21
      %s31 = scalar_select %p28, %s30, %s21
      %p32 = scmp.ge.s32.totalorder %s31, 1
      %s33 = scalar_select %p32, 0, %s31
      %s34 = ssub.s32 %s21, %s33
      %p35 = scmp.eq.s32.totalorder %s34, 0
      %s37 = sadd.s32 %s36, 1
      %s38 = scalar_select %p35, %s36, %s37
      %p41 = pneg %p35
      %p42 = scmp.eq.s32.totalorder %s14, 3
      %p43 = por %p41, %p42
      %p44 = scmp.ne.s32.totalorder %s36, %s39
      %p45 = scmp.eq.s32.totalorder %s14, 0
      %p46 = por %p44, %p45
      %p47 = scmp.ne.s32.totalorder %s36, %s39
      %p48 = scmp.eq.s32.totalorder %s19, 3
      %p49 = por %p47, %p48
      %p50 = scmp.ne.s32.totalorder %s39, %s40
      %p51 = scmp.eq.s32.totalorder %s19, 0
      %p52 = por %p50, %p51
      %p53 = scmp.ne.s32.totalorder %s39, %s40
      %p54 = scmp.eq.s32.totalorder %s20, 3
      %p55 = por %p53, %p54
      %p57 = scmp.ne.s32.totalorder %s40, %s56
      %p58 = scmp.eq.s32.totalorder %s20, 0
      %p59 = por %p57, %p58
      %s60 = ssub.s32 %s22, %s29
      %p61 = scmp.eq.s32.totalorder %s60, 0
      %s63 = sadd.s32 %s62, 1
      %s64 = scalar_select %p61, %s62, %s63
      %p67 = pneg %p61
      %p68 = scmp.eq.s32.totalorder %s14, 3
      %p69 = por %p67, %p68
      %p70 = scmp.ne.s32.totalorder %s62, %s65
      %p71 = scmp.eq.s32.totalorder %s14, 0
      %p72 = por %p70, %p71
      %p73 = scmp.ne.s32.totalorder %s62, %s65
      %p74 = scmp.eq.s32.totalorder %s19, 3
      %p75 = por %p73, %p74
      %p76 = scmp.ne.s32.totalorder %s65, %s66
      %p77 = scmp.eq.s32.totalorder %s19, 0
      %p78 = por %p76, %p77
      %p79 = scmp.ne.s32.totalorder %s65, %s66
      %p80 = scmp.eq.s32.totalorder %s20, 3
      %p81 = por %p79, %p80
      %p83 = scmp.ne.s32.totalorder %s66, %s82
      %p84 = scmp.eq.s32.totalorder %s20, 0
      %p85 = por %p83, %p84
      %s86 = ssub.s32 %s22, %s29
      %p87 = scmp.eq.s32.totalorder %s86, 0
      %s89 = sadd.s32 %s88, 1
      %s90 = scalar_select %p87, %s88, %s89
      %p93 = pneg %p87
      %p94 = scmp.eq.s32.totalorder %s14, 3
      %p95 = por %p93, %p94
      %p96 = scmp.ne.s32.totalorder %s88, %s91
      %p97 = scmp.eq.s32.totalorder %s14, 0
      %p98 = por %p96, %p97
      %p99 = scmp.ne.s32.totalorder %s88, %s91
      %p100 = scmp.eq.s32.totalorder %s19, 3
      %p101 = por %p99, %p100
      %p102 = scmp.ne.s32.totalorder %s91, %s92
      %p103 = scmp.eq.s32.totalorder %s19, 0
      %p104 = por %p102, %p103
      %p105 = scmp.ne.s32.totalorder %s91, %s92
      %p106 = scmp.eq.s32.totalorder %s20, 3
      %p107 = por %p105, %p106
      %p109 = scmp.ne.s32.totalorder %s92, %s108
      %p110 = scmp.eq.s32.totalorder %s20, 0
      %p111 = por %p109, %p110
      %s112 = ssub.s32 %s21, %s33
      %p113 = scmp.eq.s32.totalorder %s112, 0
      %s115 = sadd.s32 %s114, 1
      %s116 = scalar_select %p113, %s114, %s115
      %p119 = pneg %p113
      %p120 = scmp.eq.s32.totalorder %s14, 3
      %p121 = por %p119, %p120
      %p122 = scmp.ne.s32.totalorder %s114, %s117
      %p123 = scmp.eq.s32.totalorder %s14, 0
      %p124 = por %p122, %p123
      %p125 = scmp.ne.s32.totalorder %s114, %s117
      %p126 = scmp.eq.s32.totalorder %s19, 3
      %p127 = por %p125, %p126
      %p128 = scmp.ne.s32.totalorder %s117, %s118
      %p129 = scmp.eq.s32.totalorder %s19, 0
      %p130 = por %p128, %p129
      %p131 = scmp.ne.s32.totalorder %s117, %s118
      %p132 = scmp.eq.s32.totalorder %s20, 3
      %p133 = por %p131, %p132
      %p135 = scmp.ne.s32.totalorder %s118, %s134
      %p136 = scmp.eq.s32.totalorder %s20, 0
      %p137 = por %p135, %p136
      %p138 = scmp.le.s32.totalorder 1, %s14
      %p139 = scmp.lt.s32.totalorder %s14, 5
      %p140 = pnand %p138, %p139
      %p141 = pneg %p140
      // Predicated region
      $region9: #{tpu_custom_call.1} parent=5 // pred_check
        _
      $region10: #{tpu_custom_call.1} parent=5 // pred_check_branch
        %143 = sbr.rel (%p140) target = $region12
      $region11: #{tpu_custom_call.1} parent=5 // pred_region
        %s144 = ssub.s32 %s14, 1
        // Predicated region
        $region13: #{tpu_custom_call.1} parent=11 // pred_check
          %p145 = pneg %p52
        $region14: #{tpu_custom_call.1} parent=11 // pred_check_branch
          %147 = sbr.rel (%p145) target = $region16
        $region15: #{tpu_custom_call.1} parent=11 // pred_region
          %s148 = smul.u32 2, %s23
          %s150 = ssub.s32 128, 128
          %151 = vsyncadd [#allocation4], %s150
          %s152 = smul.addr %s148, 64
          %s153 = scalar_lea.hbm %s0, %s152
          %s154 = sshll.u32 [#allocation3], 4
          %s155 = int_to_ptr.vmem [resolvable:$true] %s154
          %160 = dma.hbm_to_vmem [thread:$0]  %s153, 128, %s155, [#allocation4], 64, 64, 4
        $region16: #{tpu_custom_call.1} parent=11 // pred_fallthru
          _
      $region12: #{tpu_custom_call.1} parent=5 // pred_fallthru
        _
      %p161 = scmp.lt.s32.totalorder %s14, 4
      // Predicated region
      $region17: #{tpu_custom_call.1} parent=5 // pred_check
        %p162 = pneg %p161
      $region18: #{tpu_custom_call.1} parent=5 // pred_check_branch
        %164 = sbr.rel (%p162) target = $region20
      $region19: #{tpu_custom_call.1} parent=5 // pred_region
        // Predicated region
        $region21: #{tpu_custom_call.1} parent=19 // pred_check
          %p165 = pneg %p72
        $region22: #{tpu_custom_call.1} parent=19 // pred_check_branch
          %167 = sbr.rel (%p165) target = $region24
        $region23: #{tpu_custom_call.1} parent=19 // pred_region
          %s168 = sand.u32 %s14, 1
          %s169 = scalar_lea.sflag [#allocation7], %s168
          %s170 = sand.u32 %s62, 1
          %s171 = smul.addr %s170, 64
          %s172 = scalar_lea.vmem [#allocation6], %s171
          %s174 = ssub.s32 1024, 1024
          %175 = vsyncadd %s169, %s174
          %s176 = smul.addr %s22, 64
          %s177 = scalar_lea.hbm %s1, %s176
          %s178 = sshll.u32 %s172, 4
          %s179 = int_to_ptr.vmem [resolvable:$true] %s178
          %184 = dma.hbm_to_vmem [thread:$0]  %s177, 1024, %s179, %s169, 256, 64, 4
        $region24: #{tpu_custom_call.1} parent=19 // pred_fallthru
          _
        // Predicated region
        $region25: #{tpu_custom_call.1} parent=19 // pred_check
          %p185 = pneg %p98
        $region26: #{tpu_custom_call.1} parent=19 // pred_check_branch
          %187 = sbr.rel (%p185) target = $region28
        $region27: #{tpu_custom_call.1} parent=19 // pred_region
          %s188 = sand.u32 %s14, 1
          %s189 = scalar_lea.sflag [#allocation7], %s188
          %s190 = sand.u32 %s88, 1
          %s191 = smul.addr %s190, 64
          %s192 = scalar_lea.vmem [#allocation8], %s191
          %s193 = smul.u32 16, %s22
          %s195 = ssub.s32 1024, 1024
          %196 = vsyncadd %s189, %s195
          %s197 = smul.addr %s193, 64
          %s198 = scalar_lea.hbm %s2, %s197
          %s199 = sshll.u32 %s192, 4
          %s200 = int_to_ptr.vmem [resolvable:$true] %s199
          %205 = dma.hbm_to_vmem [thread:$0]  %s198, 1024, %s200, %s189, 64, 64, 4
        $region28: #{tpu_custom_call.1} parent=19 // pred_fallthru
          _
      $region20: #{tpu_custom_call.1} parent=5 // pred_fallthru
        _
      %p206 = scmp.le.s32.totalorder 1, %s14
      %p207 = scmp.lt.s32.totalorder %s14, 5
      %p208 = pnand %p206, %p207
      %p209 = pneg %p208
      // Predicated region
      $region29: #{tpu_custom_call.1} parent=5 // pred_check
        _
      $region30: #{tpu_custom_call.1} parent=5 // pred_check_branch
        %211 = sbr.rel (%p208) target = $region32
      $region31: #{tpu_custom_call.1} parent=5 // pred_region
        %s212 = ssub.s32 %s14, 1
        // Predicated region
        $region33: #{tpu_custom_call.1} parent=31 // pred_check
          %p213 = pneg %p52
        $region34: #{tpu_custom_call.1} parent=31 // pred_check_branch
          %215 = sbr.rel (%p213) target = $region36
        $region35: #{tpu_custom_call.1} parent=31 // pred_region
          %216 = dma.done [#allocation4], 128
        $region36: #{tpu_custom_call.1} parent=31 // pred_fallthru
          _
        %s217 = sand.u32 %s19, 1
        %s218 = scalar_lea.sflag [#allocation7], %s217
        %s219 = sand.u32 %s65, 1
        %s220 = smul.addr %s219, 64
        %s221 = scalar_lea.vmem [#allocation6], %s220
        // Predicated region
        $region37: #{tpu_custom_call.1} parent=31 // pred_check
          %p222 = pneg %p78
        $region38: #{tpu_custom_call.1} parent=31 // pred_check_branch
          %224 = sbr.rel (%p222) target = $region40
        $region39: #{tpu_custom_call.1} parent=31 // pred_region
          %225 = dma.done %s218, 1024
        $region40: #{tpu_custom_call.1} parent=31 // pred_fallthru
          _
        %s226 = sand.u32 %s19, 1
        %s227 = scalar_lea.sflag [#allocation7], %s226
        %s228 = sand.u32 %s91, 1
        %s229 = smul.addr %s228, 64
        %s230 = scalar_lea.vmem [#allocation8], %s229
        // Predicated region
        $region41: #{tpu_custom_call.1} parent=31 // pred_check
          %p231 = pneg %p104
        $region42: #{tpu_custom_call.1} parent=31 // pred_check_branch
          %233 = sbr.rel (%p231) target = $region44
        $region43: #{tpu_custom_call.1} parent=31 // pred_region
          %234 = dma.done %s227, 1024
        $region44: #{tpu_custom_call.1} parent=31 // pred_fallthru
          _
        %p235 = pneg %p52
        %p236 = pneg %p49
        %s237 = sand.u32 %s19, 1
        %s238 = scalar_lea.sflag [#allocation7], %s237
        %s239 = sand.u32 %s65, 1
        %s240 = smul.addr %s239, 64
        %s241 = scalar_lea.vmem [#allocation6], %s240
        %p242 = pneg %p78
        %p243 = pneg %p75
        %s244 = sand.u32 %s19, 1
        %s245 = scalar_lea.sflag [#allocation7], %s244
        %s246 = sand.u32 %s91, 1
        %s247 = smul.addr %s246, 64
        %s248 = scalar_lea.vmem [#allocation8], %s247
        %p249 = pneg %p104
        %p250 = pneg %p101
        %p251 = pneg %p130
        %p252 = pneg %p127
        %s253 = smul.u32 2, %s23
        %s254 = smul.u32 16, %s24
        %s255 = smul.u32 2, %s23
        %p257 = scmp.eq.s32.totalorder %s24, 0
        // Predicated region
        $region45: #{tpu_custom_call.1} parent=31 // pred_check
          %p258 = pneg %p257
        $region46: #{tpu_custom_call.1} parent=31 // pred_check_branch
          %260 = sbr.rel (%p258) target = $region48
        $region47: #{tpu_custom_call.1} parent=31 // pred_region
          %261 = vst [vmem:[#allocation2] sm:$0xff] 0.0
          %262 = vst [vmem:[#allocation2 + $0x8] sm:$0xff] 0.0
        $region48: #{tpu_custom_call.1} parent=31 // pred_fallthru
          _
        %v263 = vld [vmem:[#allocation3] sm:$0xf]
        %v264 = vld [vmem:[#allocation3 + $0x4] sm:$0xf]
        %v265 = vld [vmem:[%s221] sm:$0xf]
        %v266 = vld [vmem:[%s221 + $0x4] sm:$0xf]
        %v267 = vld [vmem:[%s221 + $0x8] sm:$0xf]
        %v268 = vld [vmem:[%s221 + $0xc] sm:$0xf]
        %v269 = vld [vmem:[%s221 + $0x10] sm:$0xf]
        %v270 = vld [vmem:[%s221 + $0x14] sm:$0xf]
        %v271 = vld [vmem:[%s221 + $0x18] sm:$0xf]
        %v272 = vld [vmem:[%s221 + $0x1c] sm:$0xf]
        %v273 = vld [vmem:[%s221 + $0x20] sm:$0xf]
        %v274 = vld [vmem:[%s221 + $0x24] sm:$0xf]
        %v275 = vld [vmem:[%s221 + $0x28] sm:$0xf]
        %v276 = vld [vmem:[%s221 + $0x2c] sm:$0xf]
        %v277 = vld [vmem:[%s221 + $0x30] sm:$0xf]
        %v278 = vld [vmem:[%s221 + $0x34] sm:$0xf]
        %v279 = vld [vmem:[%s221 + $0x38] sm:$0xf]
        %v280 = vld [vmem:[%s221 + $0x3c] sm:$0xf]
        %v283 = vunpack.c.l.b16 %v263
        %v284 = vunpack.c.l.b16 %v264
        %v285 = vpack.c.b16 %v284, %v283
        %v303 = vunpack.c.l.b16 %v265
        %v304 = vunpack.c.l.b16 %v266
        %v305 = vunpack.c.l.b16 %v267
        %v306 = vunpack.c.l.b16 %v268
        %v307 = vunpack.c.l.b16 %v269
        %v308 = vunpack.c.l.b16 %v270
        %v309 = vunpack.c.l.b16 %v271
        %v310 = vunpack.c.l.b16 %v272
        %v311 = vunpack.c.l.b16 %v273
        %v312 = vunpack.c.l.b16 %v274
        %v313 = vunpack.c.l.b16 %v275
        %v314 = vunpack.c.l.b16 %v276
        %v315 = vunpack.c.l.b16 %v277
        %v316 = vunpack.c.l.b16 %v278
        %v317 = vunpack.c.l.b16 %v279
        %v318 = vunpack.c.l.b16 %v280
        %v319 = vpack.c.b16 %v304, %v303
        %v320 = vpack.c.b16 %v306, %v305
        %v321 = vpack.c.b16 %v308, %v307
        %v322 = vpack.c.b16 %v310, %v309
        %v323 = vpack.c.b16 %v312, %v311
        %v324 = vpack.c.b16 %v314, %v313
        %v325 = vpack.c.b16 %v316, %v315
        %v326 = vpack.c.b16 %v318, %v317
        %335 = vmatprep.subr.bf16.mxu0 0
        %336 = vmatpush1.bf16.msra.mxu0 %v319
        %337 = vmatprep.subr.bf16.mxu0 0
        %338 = vmatpush1.bf16.msra.mxu0 %v320
        %339 = vmatprep.subr.bf16.mxu0 0
        %340 = vmatpush1.bf16.msra.mxu0 %v321
        %341 = vmatprep.subr.bf16.mxu0 0
        %342 = vmatpush1.bf16.msra.mxu0 %v322
        %343 = vmatprep.subr.bf16.mxu0 0
        %344 = vmatpush1.bf16.msra.mxu0 %v323
        %345 = vmatprep.subr.bf16.mxu0 0
        %346 = vmatpush1.bf16.msra.mxu0 %v324
        %347 = vmatprep.subr.bf16.mxu0 0
        %348 = vmatpush1.bf16.msra.mxu0 %v325
        %349 = vmatprep.subr.bf16.mxu0 0
        %350 = vmatpush1.bf16.msra.mxu0 %v326
        %351 = vmatprep.subr.bf16.mxu0 0
        %352 = vmatpush1.bf16.msra.mxu0 0
        %353 = vmatprep.subr.bf16.mxu0 0
        %354 = vmatpush1.bf16.msra.mxu0 0
        %355 = vmatprep.subr.bf16.mxu0 0
        %356 = vmatpush1.bf16.msra.mxu0 0
        %357 = vmatprep.subr.bf16.mxu0 0
        %358 = vmatpush1.bf16.msra.mxu0 0
        %359 = vmatprep.subr.bf16.mxu0 0
        %360 = vmatpush1.bf16.msra.mxu0 0
        %361 = vmatprep.subr.bf16.mxu0 0
        %362 = vmatpush1.bf16.msra.mxu0 0
        %363 = vmatprep.subr.bf16.mxu0 0
        %364 = vmatpush1.bf16.msra.mxu0 0
        %365 = vmatprep.subr.bf16.mxu0 0
        %366 = vmatpush1.bf16.msra.mxu0 0
        %367 = vmatprep.mubr.bf16.mxu0 0
        %368 = vmatmul.mubr.bf16.gmra.mrb[0].mxu0 %v285
        %v369 = vpop.f32.mrb[0].mxu0
        %v370 = vadd.f32 0.0, %v369
        %v371 = vpop.f32.mrb[0].mxu0
        %v372 = vpop.f32.mrb[0].mxu0
        %v373 = vadd.f32 0.0, %v372
        %v374 = vpop.f32.mrb[0].mxu0
        %375 = vdwg.mxu0
        %v376 = vmul.f32 %v370, %v370
        %v377 = vmul.f32 %v373, %v373
        %v378 = vmul.f32 %v376, %v370
        %v379 = vmul.f32 %v377, %v373
        %v380 = vmul.f32 %v378, 0.044715
        %v381 = vmul.f32 %v379, 0.044715
        %v382 = vadd.f32 %v370, %v380
        %v383 = vadd.f32 %v373, %v381
        %v384 = vmul.f32 %v382, 0.7978846
        %v385 = vmul.f32 %v383, 0.7978846
        %v386 = vmul.f32 %v370, 0.5
        %v387 = vmul.f32 %v373, 0.5
        %v388 = vtanh.pop %v384
        %v389 = vtanh.pop %v385
        %v390 = vadd.f32 %v388, 1.0
        %v391 = vadd.f32 %v389, 1.0
        %v392 = vmul.f32 %v386, %v390
        %v393 = vmul.f32 %v387, %v391
        %v394 = vld [vmem:[#allocation2] sm:$0xff]
        %v395 = vld [vmem:[#allocation2 + $0x8] sm:$0xff]
        %v396 = vpack.c.bf16 %v393, %v392
        %v397 = vld [vmem:[%s230] sm:$0xf]
        %v398 = vld [vmem:[%s230 + $0x4] sm:$0xf]
        %v399 = vld [vmem:[%s230 + $0x8] sm:$0xf]
        %v400 = vld [vmem:[%s230 + $0xc] sm:$0xf]
        %v401 = vld [vmem:[%s230 + $0x10] sm:$0xf]
        %v402 = vld [vmem:[%s230 + $0x14] sm:$0xf]
        %v403 = vld [vmem:[%s230 + $0x18] sm:$0xf]
        %v404 = vld [vmem:[%s230 + $0x1c] sm:$0xf]
        %v405 = vld [vmem:[%s230 + $0x20] sm:$0xf]
        %v406 = vld [vmem:[%s230 + $0x24] sm:$0xf]
        %v407 = vld [vmem:[%s230 + $0x28] sm:$0xf]
        %v408 = vld [vmem:[%s230 + $0x2c] sm:$0xf]
        %v409 = vld [vmem:[%s230 + $0x30] sm:$0xf]
        %v410 = vld [vmem:[%s230 + $0x34] sm:$0xf]
        %v411 = vld [vmem:[%s230 + $0x38] sm:$0xf]
        %v412 = vld [vmem:[%s230 + $0x3c] sm:$0xf]
        %v429 = vunpack.c.l.b16 %v397
        %v430 = vunpack.c.l.b16 %v398
        %v431 = vunpack.c.l.b16 %v399
        %v432 = vunpack.c.l.b16 %v400
        %v433 = vunpack.c.l.b16 %v401
        %v434 = vunpack.c.l.b16 %v402
        %v435 = vunpack.c.l.b16 %v403
        %v436 = vunpack.c.l.b16 %v404
        %v437 = vunpack.c.l.b16 %v405
        %v438 = vunpack.c.l.b16 %v406
        %v439 = vunpack.c.l.b16 %v407
        %v440 = vunpack.c.l.b16 %v408
        %v441 = vunpack.c.l.b16 %v409
        %v442 = vunpack.c.l.b16 %v410
        %v443 = vunpack.c.l.b16 %v411
        %v444 = vunpack.c.l.b16 %v412
        %v445 = vpack.c.b16 %v430, %v429
        %v446 = vpack.c.b16 %v432, %v431
        %v447 = vpack.c.b16 %v434, %v433
        %v448 = vpack.c.b16 %v436, %v435
        %v449 = vpack.c.b16 %v438, %v437
        %v450 = vpack.c.b16 %v440, %v439
        %v451 = vpack.c.b16 %v442, %v441
        %v452 = vpack.c.b16 %v444, %v443
        %461 = vmatprep.subr.bf16.mxu0 0
        %462 = vmatpush1.bf16.msra.mxu0 %v445
        %463 = vmatprep.subr.bf16.mxu0 0
        %464 = vmatpush1.bf16.msra.mxu0 %v446
        %465 = vmatprep.subr.bf16.mxu0 0
        %466 = vmatpush1.bf16.msra.mxu0 %v447
        %467 = vmatprep.subr.bf16.mxu0 0
        %468 = vmatpush1.bf16.msra.mxu0 %v448
        %469 = vmatprep.subr.bf16.mxu0 0
        %470 = vmatpush1.bf16.msra.mxu0 %v449
        %471 = vmatprep.subr.bf16.mxu0 0
        %472 = vmatpush1.bf16.msra.mxu0 %v450
        %473 = vmatprep.subr.bf16.mxu0 0
        %474 = vmatpush1.bf16.msra.mxu0 %v451
        %475 = vmatprep.subr.bf16.mxu0 0
        %476 = vmatpush1.bf16.msra.mxu0 %v452
        %477 = vmatprep.subr.bf16.mxu0 0
        %478 = vmatpush1.bf16.msra.mxu0 0
        %479 = vmatprep.subr.bf16.mxu0 0
        %480 = vmatpush1.bf16.msra.mxu0 0
        %481 = vmatprep.subr.bf16.mxu0 0
        %482 = vmatpush1.bf16.msra.mxu0 0
        %483 = vmatprep.subr.bf16.mxu0 0
        %484 = vmatpush1.bf16.msra.mxu0 0
        %485 = vmatprep.subr.bf16.mxu0 0
        %486 = vmatpush1.bf16.msra.mxu0 0
        %487 = vmatprep.subr.bf16.mxu0 0
        %488 = vmatpush1.bf16.msra.mxu0 0
        %489 = vmatprep.subr.bf16.mxu0 0
        %490 = vmatpush1.bf16.msra.mxu0 0
        %491 = vmatprep.subr.bf16.mxu0 0
        %492 = vmatpush1.bf16.msra.mxu0 0
        %493 = vmatprep.mubr.bf16.mxu0 0
        %494 = vmatmul.mubr.bf16.gmra.mrb[0].mxu0 %v396
        %v495 = vpop.f32.mrb[0].mxu0
        %v496 = vadd.f32 0.0, %v495
        %v497 = vpop.f32.mrb[0].mxu0
        %v498 = vpop.f32.mrb[0].mxu0
        %v499 = vadd.f32 0.0, %v498
        %v500 = vpop.f32.mrb[0].mxu0
        %501 = vdwg.mxu0
        %v502 = vadd.f32 %v394, %v496
        %v503 = vadd.f32 %v395, %v499
        %504 = vst [vmem:[#allocation2] sm:$0xff] %v502
        %505 = vst [vmem:[#allocation2 + $0x8] sm:$0xff] %v503
        %p506 = scmp.eq.s32.totalorder %s24, 3
        // Predicated region
        $region49: #{tpu_custom_call.1} parent=31 // pred_check
          %p507 = pneg %p506
        $region50: #{tpu_custom_call.1} parent=31 // pred_check_branch
          %509 = sbr.rel (%p507) target = $region52
        $region51: #{tpu_custom_call.1} parent=31 // pred_region
          %v510 = vld [vmem:[#allocation2] sm:$0xff]
          %v511 = vld [vmem:[#allocation2 + $0x8] sm:$0xff]
          %v512 = vpack.c.bf16 %v511, %v510
          %v514 = vunpack.c.l.b16 %v512
          %v515 = vunpack.c.h.b16 %v512
          %v516 = vpack.c.b16 %v514, %v514
          %v517 = vpack.c.b16 %v515, %v515
          %520 = vst [vmem:[#allocation9] sm:$0xf] %v516
          %521 = vst [vmem:[#allocation9 + $0x4] sm:$0xf] %v517
        $region52: #{tpu_custom_call.1} parent=31 // pred_fallthru
          _
        // Predicated region
        $region53: #{tpu_custom_call.1} parent=31 // pred_check
          %p522 = pneg %p127
        $region54: #{tpu_custom_call.1} parent=31 // pred_check_branch
          %524 = sbr.rel (%p522) target = $region56
        $region55: #{tpu_custom_call.1} parent=31 // pred_region
          %s525 = smul.u32 2, %s23
          %s527 = ssub.s32 128, 128
          %528 = vsyncadd [#allocation5], %s527
          %s529 = smul.addr %s525, 64
          %s530 = scalar_lea.hbm %s3, %s529
          %s531 = sshll.u32 [#allocation9], 4
          %s532 = int_to_ptr.vmem [resolvable:$true] %s531
          %537 = dma.vmem_to_hbm [thread:$0]  %s532, 128, %s530, [#allocation5], 64, 64, 4
        $region56: #{tpu_custom_call.1} parent=31 // pred_fallthru
          _
        // Predicated region
        $region57: #{tpu_custom_call.1} parent=31 // pred_check
          %p538 = pneg %p127
        $region58: #{tpu_custom_call.1} parent=31 // pred_check_branch
          %540 = sbr.rel (%p538) target = $region60
        $region59: #{tpu_custom_call.1} parent=31 // pred_region
          %541 = dma.done [#allocation5], 128
        $region60: #{tpu_custom_call.1} parent=31 // pred_fallthru
          _
      $region32: #{tpu_custom_call.1} parent=5 // pred_fallthru
        _
      %p542 = scmp.le.s32.totalorder 2, %s14
      // Predicated region
      $region61: #{tpu_custom_call.1} parent=5 // pred_check
        %p543 = pneg %p542
      $region62: #{tpu_custom_call.1} parent=5 // pred_check_branch
        %545 = sbr.rel (%p543) target = $region64
      $region63: #{tpu_custom_call.1} parent=5 // pred_region
        %s546 = ssub.s32 %s14, 2
      $region64: #{tpu_custom_call.1} parent=5 // pred_fallthru
        _
    $region6: #{tpu_custom_call.1} parent=1 // loop_footer
      %s18 = sadd.s32 1, %s14
    $region7: #{tpu_custom_call.1} parent=1 // loop_footer_branch
      %13 = sbr.rel target = $region3
    $region8: #{tpu_custom_call.1} parent=1 // loop_exit
      _
    %547 = vsyncpa [#allocation4], 1
    %s548 = scalar_lea.sflag [#allocation4], 1
    %549 = vsyncpa %s548, 1
    %550 = vsyncpa [#allocation7], 1
    %s551 = scalar_lea.sflag [#allocation7], 1
    %552 = vsyncpa %s551, 1
    %553 = vsyncpa [#allocation5], 1
    %s554 = scalar_lea.sflag [#allocation5], 1
    %555 = vsyncpa %s554, 1

</llo_original>
